<compile_context>
chip_gen: v7x
topology: tpu7x:2x2x1
jax: 0.10.0
libtpu: 0.0.40
codegen_flags: <defaults>
</compile_context>

<pallas_src>
import functools

import jax
import jax.numpy as jnp
from jax import lax
from jax.experimental import pallas as pl
from jax.experimental.pallas import tpu as pltpu

LANES = 128
CHUNK_ROWS = 512                 # strip-mine chunk: (512, 128) f32 = 64 vregs/stream
MAX_BLOCK_ROWS = 8192            # absolute cap on rows per grid step
VMEM_INPUT_BUDGET = 24 << 20     # 3 inputs x 2 pipeline buffers of VMEM


def _round_up(x, m):
    return (x + m - 1) // m * m


def _num_tensorcores():
    """TensorCores per Pallas device: 2 on v7x, 1 on v5e/v6e (default 1)."""
    try:
        kind = jax.devices()[0].device_kind.lower()
    except Exception:
        return 1
    # TODO(synk): extend detection to megacore v4/v5p if those are targeted.
    return 2 if "v7" in kind else 1


def _gqnn_kernel(low_ref, up_ref, tgt_ref, out_ref, *,
                 block_rows, chunk_rows, steps_per_core, valid_rows,
                 needs_mask, use_coverage, use_width):
    c = pl.program_id(0)
    i = pl.program_id(1)

    @pl.when(i == 0)
    def _init():
        out_ref[...] = jnp.zeros_like(out_ref)

    nchunks = block_rows // chunk_rows
    if not use_coverage and not use_width:
        nq = 1
    else:
        nq = (2 if use_coverage else 0) + (1 if use_width else 0)

    gstart = (c * steps_per_core + i) * block_rows

    def chunk_partials(start, masked):
        # Load one (chunk_rows, 128) slab per input, fold to (8, 128) partials.
        low = low_ref[pl.ds(start, chunk_rows), :].astype(jnp.float32)
        up = up_ref[pl.ds(start, chunk_rows), :].astype(jnp.float32)
        tgt = tgt_ref[pl.ds(start, chunk_rows), :].astype(jnp.float32)

        qs = []
        if not use_coverage and not use_width:
            mid_err = (low + up) * 0.5 - tgt
            qs.append(mid_err * mid_err)                 # MSE numerator
        else:
            if use_coverage:
                below = jnp.maximum(low - tgt, 0.0)
                above = jnp.maximum(tgt - up, 0.0)
                viol = below + above                      # 0 on covered points
                qs.append(viol)                           # sum of violations
                qs.append((viol > 0.0).astype(jnp.float32))  # violation count
            if use_width:
                qs.append(up - low)                       # raw width; x0.5 later

        if masked:
            # Rows at/after `valid_rows` (partial last block / phantom block)
            # carry garbage; zero the accumulated quantities for them.
            row_ids = (gstart + start
                       + lax.broadcasted_iota(jnp.int32, (chunk_rows, LANES), 0))
            valid = row_ids < valid_rows
            qs = [jnp.where(valid, q, 0.0) for q in qs]

        # (chunk_rows,128) -> (chunk_rows//8, 8, 128): regroups vregs; the
        # axis-0 sum is pure VPU vreg adds (no cross-lane XLU work).
        return tuple(jnp.sum(q.reshape(chunk_rows // 8, 8, LANES), axis=0)
                     for q in qs)

    def run(masked):
        if nchunks == 1:
            parts = chunk_partials(0, masked)
        else:
            def body(r, carry):
                p = chunk_partials(r * chunk_rows, masked)
                return tuple(a + b for a, b in zip(carry, p))
            init = tuple(jnp.zeros((8, LANES), jnp.float32) for _ in range(nq))
            parts = lax.fori_loop(0, nchunks, body, init, unroll=True)
        for q in range(nq):
            out_ref[0, q] += parts[q]

    if needs_mask:
        boundary = gstart + block_rows > valid_rows

        @pl.when(jnp.logical_not(boundary))
        def _fast():
            run(False)

        @pl.when(boundary)
        def _tail():
            run(True)
    else:
        run(False)


def _reduce_sums(preds_low, preds_upper, target, use_coverage, use_width):
    n = preds_low.size
    low = preds_low.reshape(-1)
    up = preds_upper.reshape(-1)
    tgt = target.reshape(-1)

    # Only pad (with neutral zeros) when n is not a multiple of 128.
    pad = (-n) % LANES
    if pad:
        low = jnp.pad(low, (0, pad))
        up = jnp.pad(up, (0, pad))
        tgt = jnp.pad(tgt, (0, pad))
    rows = (n + pad) // LANES
    low = low.reshape(rows, LANES)
    up = up.reshape(rows, LANES)
    tgt = tgt.reshape(rows, LANES)

    itemsize = jnp.dtype(preds_low.dtype).itemsize
    # Minimum packed sublane tile for the streamed dtype (8 f32 / 16 bf16 / 32 i8).
    sub = {1: 32, 2: 16, 4: 8}.get(itemsize, 8)

    # Biggest lane-dense tile that keeps 3 inputs x 2 buffers in ~24 MiB.
    max_block_rows = (VMEM_INPUT_BUDGET // (6 * LANES * itemsize))
    max_block_rows = max(CHUNK_ROWS, max_block_rows // CHUNK_ROWS * CHUNK_ROWS)
    max_block_rows = min(max_block_rows, MAX_BLOCK_ROWS)

    chunk_rows = min(CHUNK_ROWS, _round_up(rows, sub))
    block_rows = min(max_block_rows, _round_up(rows, chunk_rows))

    ncores = _num_tensorcores()
    total_blocks = -(-rows // block_rows)
    steps_per_core = -(-total_blocks // ncores)
    needs_mask = (ncores * steps_per_core * block_rows) != rows

    if not use_coverage and not use_width:
        nq = 1                                   # [mse_sum]
    else:
        nq = (2 if use_coverage else 0) + (1 if use_width else 0)

    if ncores * steps_per_core == total_blocks:
        def in_map(c, i):
            return (c * steps_per_core + i, 0)
    else:
        last = total_blocks - 1

        def in_map(c, i):
            # Phantom tail blocks (multi-core split only) are clamped to the
            # last real block for the DMA; the kernel masks them out using
            # the *unclamped* logical block position.
            return (jnp.minimum(c * steps_per_core + i, last), 0)

    in_spec = pl.BlockSpec((block_rows, LANES), in_map)
    out_spec = pl.BlockSpec((1, nq, 8, LANES), lambda c, i: (c, 0, 0, 0))

    kernel = functools.partial(
        _gqnn_kernel, block_rows=block_rows, chunk_rows=chunk_rows,
        steps_per_core=steps_per_core, valid_rows=rows, needs_mask=needs_mask,
        use_coverage=use_coverage, use_width=use_width)

    cost = pl.CostEstimate(
        flops=10 * n, transcendentals=0,
        bytes_accessed=3 * n * itemsize + ncores * nq * 8 * LANES * 4)

    # 2x-buffered inputs + headroom; >= 32 MiB raises v5e's 16 MiB default,
    # still within every generation's physical VMEM.
    vmem_limit = int(min(64 << 20,
                         max(32 << 20,
                             3 * 2 * block_rows * LANES * itemsize + (4 << 20))))

    acc = pl.pallas_call(
        kernel,
        out_shape=jax.ShapeDtypeStruct((ncores, nq, 8, LANES), jnp.float32),
        grid_spec=pltpu.PrefetchScalarGridSpec(
            num_scalar_prefetch=0,
            grid=(ncores, steps_per_core),
            in_specs=[in_spec, in_spec, in_spec],
            out_specs=out_spec),
        compiler_params=pltpu.CompilerParams(
            dimension_semantics=("parallel", "arbitrary"),
            vmem_limit_bytes=vmem_limit),
        cost_estimate=cost,
    )(low, up, tgt)

    sums = acc.sum(axis=(0, 2, 3))   # tiny (nq,) final reduce in plain JAX
    return sums, n


@functools.partial(jax.custom_vjp, nondiff_argnums=(3, 4, 5, 6))
def _gqnn_loss_core(preds_low, preds_upper, target, target_coverage,
                    lambda_factor, use_coverage, use_width):
    sums, n = _reduce_sums(preds_low, preds_upper, target,
                           use_coverage, use_width)
    n_f = jnp.float32(n)

    if not use_coverage and not use_width:
        return sums[0] / n_f                      # F.mse_loss on the midpoint

    loss = jnp.float32(0.0)
    if use_coverage:
        viol_sum, viol_cnt = sums[0], sums[1]
        mean_violation = jnp.where(
            viol_cnt > 0, viol_sum / jnp.maximum(viol_cnt, 1.0), 0.0)
        covered_sum = n_f - viol_cnt              # exact complement
        coverage_penalty = (jnp.float32(target_coverage)
                            - covered_sum / n_f) ** 2
        loss = loss + mean_violation + coverage_penalty
    if use_width:
        raw_width_sum = sums[2] if use_coverage else sums[0]
        # diffs.mean() == 0.5 * sum(up - low) / n
        loss = loss + jnp.float32(lambda_factor) * 2.0 * (0.5 * raw_width_sum / n_f)
    return loss


def _gqnn_fwd(preds_low, preds_upper, target, target_coverage,
              lambda_factor, use_coverage, use_width):
    out = _gqnn_loss_core(preds_low, preds_upper, target, target_coverage,
                          lambda_factor, use_coverage, use_width)
    return out, (preds_low, preds_upper, target)


def _gqnn_bwd(target_coverage, lambda_factor, use_coverage, use_width,
              residuals, g):
    # TODO(synk): backward falls back to the pure-JAX reference (one extra
    # streaming pass); a dedicated Pallas VJP kernel is not built here.
    low, up, tgt = residuals
    _, vjp = jax.vjp(
        lambda l, u, t: _reference_loss(
            l, u, t, target_coverage=target_coverage,
            lambda_factor=lambda_factor, use_coverage_loss=use_coverage,
            use_width_loss=use_width),
        low, up, tgt)
    return vjp(g)


_gqnn_loss_core.defvjp(_gqnn_fwd, _gqnn_bwd)


@functools.partial(jax.jit, static_argnames=(
    "target_coverage", "lambda_factor", "use_coverage_loss", "use_width_loss"))
def gqnn_loss(preds_low, preds_upper, target, *, target_coverage=0.9,
              lambda_factor=0.1, use_coverage_loss=True, use_width_loss=True):
    # TODO(synk): the PyTorch module also stashes self.last_loss_terms via
    # .item() host syncs; that side-effect dict is not reproduced here.
    return _gqnn_loss_core(preds_low, preds_upper, target,
                           float(target_coverage), float(lambda_factor),
                           bool(use_coverage_loss), bool(use_width_loss))


def _reference_loss(preds_low, preds_upper, target, target_coverage=0.9,
                    lambda_factor=0.1, use_coverage_loss=True,
                    use_width_loss=True):
    """Pure-JAX reference mirroring the PyTorch forward (also used as VJP)."""
    low = preds_low.astype(jnp.float32)
    up = preds_upper.astype(jnp.float32)
    tgt = target.astype(jnp.float32)
    diffs = (up - low) / 2.0
    if not use_coverage_loss and not use_width_loss:
        mid = (low + up) / 2.0
        return jnp.mean((mid - tgt) ** 2)
    loss = 0.0
    if use_coverage_loss:
        below = jnp.maximum(low - tgt, 0.0)
        above = jnp.maximum(tgt - up, 0.0)
        total_viol = below + above
        is_viol = ((tgt < low) | (tgt > up)).astype(jnp.float32)
        cnt = is_viol.sum()
        mean_viol = jnp.where(
            cnt > 0, (total_viol * is_viol).sum() / jnp.maximum(cnt, 1.0), 0.0)
        covered = ((low <= tgt) & (tgt <= up)).astype(jnp.float32)
        coverage_penalty = (target_coverage - covered.mean()) ** 2
        loss = loss + mean_viol + coverage_penalty
    if use_width_loss:
        loss = loss + lambda_factor * 2.0 * diffs.mean()
    return jnp.asarray(loss, jnp.float32)


if __name__ == "__main__":
    key = jax.random.PRNGKey(0)
    k1, k2, k3 = jax.random.split(key, 3)

    shape = (2, 4, 16, 16)  # batch=2, channels=4, 16x16 spatial
    base = jax.random.normal(k1, shape, dtype=jnp.float32)
    half_width = jnp.abs(jax.random.normal(k2, shape, dtype=jnp.float32)) * 0.5
    preds_low = base - half_width
    preds_upper = base + half_width
    target = base + jax.random.normal(k3, shape, dtype=jnp.float32) * 0.7

    loss = gqnn_loss(preds_low, preds_upper, target,
                     target_coverage=0.9, lambda_factor=0.1,
                     use_coverage_loss=True, use_width_loss=True)
    loss = jax.block_until_ready(loss)
    ref = _reference_loss(preds_low, preds_upper, target)
    assert jnp.allclose(loss, ref, rtol=1e-5, atol=1e-5), (loss, ref)

    # MSE fallback path (no coverage, no width).
    mse = gqnn_loss(preds_low, preds_upper, target,
                    use_coverage_loss=False, use_width_loss=False)
    mse_ref = _reference_loss(preds_low, preds_upper, target,
                              use_coverage_loss=False, use_width_loss=False)
    assert jnp.allclose(jax.block_until_ready(mse), mse_ref,
                        rtol=1e-5, atol=1e-5), (mse, mse_ref)

    # Width-only path.
    w = gqnn_loss(preds_low, preds_upper, target,
                  use_coverage_loss=False, use_width_loss=True)
    w_ref = _reference_loss(preds_low, preds_upper, target,
                            use_coverage_loss=False, use_width_loss=True)
    assert jnp.allclose(jax.block_until_ready(w), w_ref,
                        rtol=1e-5, atol=1e-5), (w, w_ref)

    # Odd size (n % 128 != 0): exercises lane zero-padding + row masking.
    oshape = (3, 5, 7)
    ob = jax.random.normal(k1, oshape, dtype=jnp.float32)
    ohw = jnp.abs(jax.random.normal(k2, oshape, dtype=jnp.float32)) * 0.5
    ol, ou = ob - ohw, ob + ohw
    ot = ob + jax.random.normal(k3, oshape, dtype=jnp.float32) * 0.7
    oloss = gqnn_loss(ol, ou, ot)
    oref = _reference_loss(ol, ou, ot)
    assert jnp.allclose(jax.block_until_ready(oloss), oref,
                        rtol=1e-5, atol=1e-5), (oloss, oref)

    # Medium size: exercises multi-step accumulation, the strip-mined
    # fori_loop body and the pl.when-gated masked boundary block.
    mshape = (9, 128, 1024)
    mb = jax.random.normal(k1, mshape, dtype=jnp.float32)
    mhw = jnp.abs(jax.random.normal(k2, mshape, dtype=jnp.float32)) * 0.5
    ml, mu = mb - mhw, mb + mhw
    mt = mb + jax.random.normal(k3, mshape, dtype=jnp.float32) * 0.7
    mloss = gqnn_loss(ml, mu, mt)
    mref = _reference_loss(ml, mu, mt)
    assert jnp.allclose(jax.block_until_ready(mloss), mref,
                        rtol=1e-4, atol=1e-5), (mloss, mref)

    # bf16 inputs stream in their native dtype (half the HBM bytes).
    bl = preds_low.astype(jnp.bfloat16)
    bu = preds_upper.astype(jnp.bfloat16)
    bt = target.astype(jnp.bfloat16)
    bloss = gqnn_loss(bl, bu, bt)
    bref = _reference_loss(bl, bu, bt)
    assert jnp.allclose(jax.block_until_ready(bloss), bref,
                        rtol=1e-4, atol=1e-5), (bloss, bref)

    # Gradients (training loss): custom_vjp falls back to the JAX reference.
    g = jax.grad(gqnn_loss, argnums=(0, 1, 2))(preds_low, preds_upper, target)
    gr = jax.grad(_reference_loss, argnums=(0, 1, 2))(preds_low, preds_upper,
                                                      target)
    for a, b in zip(jax.block_until_ready(g), gr):
        assert jnp.allclose(a, b, rtol=1e-5, atol=1e-6)

    print("KERNEL_OK")
</pallas_src>

<mosaic_0001>
module attributes {stable_mosaic.version = 11 : i64} {
  func.func @_gqnn_kernel(%arg0: i32, %arg1: i32, %arg2: memref<16x128xf32, #tpu.memory_space<vmem>>, %arg3: memref<16x128xf32, #tpu.memory_space<vmem>>, %arg4: memref<16x128xf32, #tpu.memory_space<vmem>>, %arg5: memref<1x3x8x128xf32, #tpu.memory_space<vmem>>) attributes {dimension_semantics = [#tpu.dimension_semantics<parallel>, #tpu.dimension_semantics<arbitrary>], iteration_bounds = array<i64: 1, 1>, scalar_prefetch = 0 : i64, scratch_operands = 0 : i64, tpu.core_type = #tpu.core_type<tc>, window_params = [{transform_indices = @transform_0, window_bounds = array<i64: 16, 128>}, {transform_indices = @transform_1, window_bounds = array<i64: 16, 128>}, {transform_indices = @transform_2, window_bounds = array<i64: 16, 128>}, {transform_indices = @transform_3, window_bounds = array<i64: 1, 3, 8, 128>}]} {
    %c0_i32 = arith.constant 0 : i32
    %0 = arith.cmpi eq, %arg1, %c0_i32 : i32
    %1 = arith.extui %0 : i1 to i32
    %c0_i32_0 = arith.constant 0 : i32
    %2 = arith.cmpi ne, %1, %c0_i32_0 : i32
    scf.if %2 {
      %cst_33 = arith.constant 0.000000e+00 : f32
      %42 = vector.broadcast %cst_33 : f32 to vector<1x3x8x128xf32>
      %c0_34 = arith.constant 0 : index
      %c0_35 = arith.constant 0 : index
      %c0_36 = arith.constant 0 : index
      %c0_37 = arith.constant 0 : index
      %43 = vector.load %arg5[%c0_34, %c0_35, %c0_36, %c0_37] : memref<1x3x8x128xf32, #tpu.memory_space<vmem>>, vector<1x3x8x128xf32>
      tpu.vector_store %arg5[%c0_34, %c0_35, %c0_36, %c0_37], %42 {strides = array<i32>} : memref<1x3x8x128xf32, #tpu.memory_space<vmem>>, vector<1x3x8x128xf32>,
    } else {
    }
    %c0 = arith.constant 0 : index
    %c0_1 = arith.constant 0 : index
    %3 = vector.load %arg2[%c0, %c0_1] : memref<16x128xf32, #tpu.memory_space<vmem>>, vector<16x128xf32>
    %c0_2 = arith.constant 0 : index
    %c0_3 = arith.constant 0 : index
    %4 = vector.load %arg3[%c0_2, %c0_3] : memref<16x128xf32, #tpu.memory_space<vmem>>, vector<16x128xf32>
    %c0_4 = arith.constant 0 : index
    %c0_5 = arith.constant 0 : index
    %5 = vector.load %arg4[%c0_4, %c0_5] : memref<16x128xf32, #tpu.memory_space<vmem>>, vector<16x128xf32>
    %6 = arith.subf %3, %5 : vector<16x128xf32>
    %cst = arith.constant 0.000000e+00 : f32
    %7 = vector.broadcast %cst : f32 to vector<16x128xf32>
    %8 = arith.maximumf %6, %7 : vector<16x128xf32>
    %9 = arith.subf %5, %4 : vector<16x128xf32>
    %cst_6 = arith.constant 0.000000e+00 : f32
    %10 = vector.broadcast %cst_6 : f32 to vector<16x128xf32>
    %11 = arith.maximumf %9, %10 : vector<16x128xf32>
    %12 = arith.addf %8, %11 : vector<16x128xf32>
    %cst_7 = arith.constant 0.000000e+00 : f32
    %13 = vector.broadcast %cst_7 : f32 to vector<16x128xf32>
    %14 = arith.cmpf ogt, %12, %13 : vector<16x128xf32>
    %15 = arith.extui %14 : vector<16x128xi1> to vector<16x128xi32>
    %16 = arith.sitofp %15 : vector<16x128xi32> to vector<16x128xf32>
    %17 = arith.subf %4, %3 : vector<16x128xf32>
    %18 = vector.shape_cast %12 : vector<16x128xf32> to vector<2x8x128xf32>
    %cst_8 = arith.constant dense<0.000000e+00> : vector<8x128xf32>
    %19 = vector.multi_reduction <add>, %18, %cst_8 [0] : vector<2x8x128xf32> to vector<8x128xf32>
    %20 = vector.shape_cast %16 : vector<16x128xf32> to vector<2x8x128xf32>
    %cst_9 = arith.constant dense<0.000000e+00> : vector<8x128xf32>
    %21 = vector.multi_reduction <add>, %20, %cst_9 [0] : vector<2x8x128xf32> to vector<8x128xf32>
    %22 = vector.shape_cast %17 : vector<16x128xf32> to vector<2x8x128xf32>
    %cst_10 = arith.constant dense<0.000000e+00> : vector<8x128xf32>
    %23 = vector.multi_reduction <add>, %22, %cst_10 [0] : vector<2x8x128xf32> to vector<8x128xf32>
    %c0_11 = arith.constant 0 : index
    %c0_12 = arith.constant 0 : index
    %c0_13 = arith.constant 0 : index
    %c0_14 = arith.constant 0 : index
    %24 = vector.load %arg5[%c0_11, %c0_12, %c0_13, %c0_14] : memref<1x3x8x128xf32, #tpu.memory_space<vmem>>, vector<1x1x8x128xf32>
    %25 = vector.shape_cast %24 : vector<1x1x8x128xf32> to vector<8x128xf32>
    %26 = arith.addf %25, %19 : vector<8x128xf32>
    %c0_15 = arith.constant 0 : index
    %c0_16 = arith.constant 0 : index
    %c0_17 = arith.constant 0 : index
    %c0_18 = arith.constant 0 : index
    %27 = vector.load %arg5[%c0_15, %c0_16, %c0_17, %c0_18] : memref<1x3x8x128xf32, #tpu.memory_space<vmem>>, vector<1x1x8x128xf32>
    %28 = vector.shape_cast %27 : vector<1x1x8x128xf32> to vector<8x128xf32>
    %29 = vector.shape_cast %26 : vector<8x128xf32> to vector<1x1x8x128xf32>
    tpu.vector_store %arg5[%c0_15, %c0_16, %c0_17, %c0_18], %29 {strides = array<i32>} : memref<1x3x8x128xf32, #tpu.memory_space<vmem>>, vector<1x1x8x128xf32>,
    %c0_19 = arith.constant 0 : index
    %c1 = arith.constant 1 : index
    %c0_20 = arith.constant 0 : index
    %c0_21 = arith.constant 0 : index
    %30 = vector.load %arg5[%c0_19, %c1, %c0_20, %c0_21] : memref<1x3x8x128xf32, #tpu.memory_space<vmem>>, vector<1x1x8x128xf32>
    %31 = vector.shape_cast %30 : vector<1x1x8x128xf32> to vector<8x128xf32>
    %32 = arith.addf %31, %21 : vector<8x128xf32>
    %c0_22 = arith.constant 0 : index
    %c1_23 = arith.constant 1 : index
    %c0_24 = arith.constant 0 : index
    %c0_25 = arith.constant 0 : index
    %33 = vector.load %arg5[%c0_22, %c1_23, %c0_24, %c0_25] : memref<1x3x8x128xf32, #tpu.memory_space<vmem>>, vector<1x1x8x128xf32>
    %34 = vector.shape_cast %33 : vector<1x1x8x128xf32> to vector<8x128xf32>
    %35 = vector.shape_cast %32 : vector<8x128xf32> to vector<1x1x8x128xf32>
    tpu.vector_store %arg5[%c0_22, %c1_23, %c0_24, %c0_25], %35 {strides = array<i32>} : memref<1x3x8x128xf32, #tpu.memory_space<vmem>>, vector<1x1x8x128xf32>,
    %c0_26 = arith.constant 0 : index
    %c2 = arith.constant 2 : index
    %c0_27 = arith.constant 0 : index
    %c0_28 = arith.constant 0 : index
    %36 = vector.load %arg5[%c0_26, %c2, %c0_27, %c0_28] : memref<1x3x8x128xf32, #tpu.memory_space<vmem>>, vector<1x1x8x128xf32>
    %37 = vector.shape_cast %36 : vector<1x1x8x128xf32> to vector<8x128xf32>
    %38 = arith.addf %37, %23 : vector<8x128xf32>
    %c0_29 = arith.constant 0 : index
    %c2_30 = arith.constant 2 : index
    %c0_31 = arith.constant 0 : index
    %c0_32 = arith.constant 0 : index
    %39 = vector.load %arg5[%c0_29, %c2_30, %c0_31, %c0_32] : memref<1x3x8x128xf32, #tpu.memory_space<vmem>>, vector<1x1x8x128xf32>
    %40 = vector.shape_cast %39 : vector<1x1x8x128xf32> to vector<8x128xf32>
    %41 = vector.shape_cast %38 : vector<8x128xf32> to vector<1x1x8x128xf32>
    tpu.vector_store %arg5[%c0_29, %c2_30, %c0_31, %c0_32], %41 {strides = array<i32>} : memref<1x3x8x128xf32, #tpu.memory_space<vmem>>, vector<1x1x8x128xf32>,
    return
  }
  func.func @transform_0(%arg0: i32, %arg1: i32) -> (i32, i32) {
    %c1_i32 = arith.constant 1 : i32
    %0 = arith.muli %arg0, %c1_i32 : i32
    %1 = arith.addi %0, %arg1 : i32
    %c0_i32 = arith.constant 0 : i32
    %c0_i32_0 = arith.constant 0 : i32
    return %1, %c0_i32 : i32, i32
  }
  func.func @transform_1(%arg0: i32, %arg1: i32) -> (i32, i32) {
    %c1_i32 = arith.constant 1 : i32
    %0 = arith.muli %arg0, %c1_i32 : i32
    %1 = arith.addi %0, %arg1 : i32
    %c0_i32 = arith.constant 0 : i32
    %c0_i32_0 = arith.constant 0 : i32
    return %1, %c0_i32 : i32, i32
  }
  func.func @transform_2(%arg0: i32, %arg1: i32) -> (i32, i32) {
    %c1_i32 = arith.constant 1 : i32
    %0 = arith.muli %arg0, %c1_i32 : i32
    %1 = arith.addi %0, %arg1 : i32
    %c0_i32 = arith.constant 0 : i32
    %c0_i32_0 = arith.constant 0 : i32
    return %1, %c0_i32 : i32, i32
  }
  func.func @transform_3(%arg0: i32, %arg1: i32) -> (i32, i32, i32, i32) {
    %c0_i32 = arith.constant 0 : i32
    %c0_i32_0 = arith.constant 0 : i32
    %c0_i32_1 = arith.constant 0 : i32
    %c0_i32_2 = arith.constant 0 : i32
    return %arg0, %c0_i32, %c0_i32_0, %c0_i32_1 : i32, i32, i32, i32
  }
}

</mosaic_0001>

<llo_original>
// kernel: gqnn_loss.1
$region0: #{gqnn_loss.1}
  #allocation0 [shape = 'u32[]', space=smem, size = 0x4, offset = 0x4, fixed_abs, tag = 'smem constant byte address 0x4 - core index']
  #allocation1 [shape = 'u32[144,128]{1,0:T(1,128)}', space=vmem, size = 0x12000, scoped, tag = 'internal scratch']
  %s0 = inlined_call_operand.vmem [shape: f32[16,128], index: 0, kind: input, shape index: {}]
  %s1 = inlined_call_operand.vmem [shape: f32[16,128], index: 1, kind: input, shape index: {}]
  %s2 = inlined_call_operand.vmem [shape: f32[16,128], index: 2, kind: input, shape index: {}]
  %s3 = inlined_call_operand.vmem [shape: f32[1,3,8,128], index: 3, kind: output, shape index: {}]
  %s4 = sld [smem:[#allocation0]]
  $region26: #{gqnn_loss.1} parent=0
    _
  %s6 = ssub.s32 1, %s4
  %s7 = scalar_select 0, %s6, %s4
  // Predicated region
  $region2: #{gqnn_loss.1} parent=0 // pred_check
    _
  $region3: #{gqnn_loss.1} parent=0 // pred_check_branch
    %9 = sbr.rel (0) target = $region5
  $region4: #{gqnn_loss.1} parent=0 // pred_region
    %s10 = sadd.s32 0, 0
    %s11 = smul.u32 2, %s10
    %p12 = scmp.lt.s32.totalorder %s11, 1
    %s13 = scalar_select %p12, %s11, 1
    %s14 = smul.addr %s13, 8
    %s15 = scalar_lea.vmem %s0, %s14
    %s16 = sadd.s32 0, 0
    %s17 = smul.u32 2, %s16
  $region5: #{gqnn_loss.1} parent=0 // pred_fallthru
    _
  // Predicated region
  $region6: #{gqnn_loss.1} parent=0 // pred_check
    _
  $region7: #{gqnn_loss.1} parent=0 // pred_check_branch
    %19 = sbr.rel (0) target = $region9
  $region8: #{gqnn_loss.1} parent=0 // pred_region
    %s20 = sadd.s32 0, 0
    %s21 = smul.u32 2, %s20
    %p22 = scmp.lt.s32.totalorder %s21, 1
    %s23 = scalar_select %p22, %s21, 1
    %s24 = smul.addr %s23, 8
    %s25 = scalar_lea.vmem %s1, %s24
    %s26 = sadd.s32 0, 0
    %s27 = smul.u32 2, %s26
  $region9: #{gqnn_loss.1} parent=0 // pred_fallthru
    _
  // Predicated region
  $region10: #{gqnn_loss.1} parent=0 // pred_check
    _
  $region11: #{gqnn_loss.1} parent=0 // pred_check_branch
    %29 = sbr.rel (0) target = $region13
  $region12: #{gqnn_loss.1} parent=0 // pred_region
    %s30 = sadd.s32 0, 0
    %s31 = smul.u32 2, %s30
    %p32 = scmp.lt.s32.totalorder %s31, 1
    %s33 = scalar_select %p32, %s31, 1
    %s34 = smul.addr %s33, 8
    %s35 = scalar_lea.vmem %s2, %s34
    %s36 = sadd.s32 0, 0
    %s37 = smul.u32 2, %s36
  $region13: #{gqnn_loss.1} parent=0 // pred_fallthru
    _
  %s38 = sadd.s32 0, 0
  %s39 = smul.u32 2, %s38
  %p40 = scmp.lt.s32.totalorder %s39, 1
  %s41 = scalar_select %p40, %s39, 1
  %s42 = smul.addr %s41, 8
  %s43 = scalar_lea.vmem %s0, %s42
  %s44 = sadd.s32 0, 0
  %s45 = smul.u32 2, %s44
  %p46 = scmp.lt.s32.totalorder %s45, 1
  %s47 = scalar_select %p46, %s45, 1
  %s48 = smul.addr %s47, 8
  %s49 = scalar_lea.vmem %s1, %s48
  %s50 = sadd.s32 0, 0
  %s51 = smul.u32 2, %s50
  %p52 = scmp.lt.s32.totalorder %s51, 1
  %s53 = scalar_select %p52, %s51, 1
  %s54 = smul.addr %s53, 8
  %s55 = scalar_lea.vmem %s2, %s54
  %s56 = sadd.s32 0, 0
  %s57 = smul.u32 2, %s56
  %p58 = scmp.lt.s32.totalorder %s57, 1
  %s59 = scalar_select %p58, %s57, 1
  %s60 = smul.addr %s59, 8
  %s61 = scalar_lea.vmem %s0, %s60
  %s62 = sadd.s32 0, 0
  %s63 = smul.u32 2, %s62
  %s64 = sadd.s32 0, 0
  %s65 = smul.u32 2, %s64
  %p66 = scmp.lt.s32.totalorder %s65, 1
  %s67 = scalar_select %p66, %s65, 1
  %s68 = smul.addr %s67, 8
  %s69 = scalar_lea.vmem %s1, %s68
  %s70 = sadd.s32 0, 0
  %s71 = smul.u32 2, %s70
  %s72 = sadd.s32 0, 0
  %s73 = smul.u32 2, %s72
  %p74 = scmp.lt.s32.totalorder %s73, 1
  %s75 = scalar_select %p74, %s73, 1
  %s76 = smul.addr %s75, 8
  %s77 = scalar_lea.vmem %s2, %s76
  %s78 = sadd.s32 0, 0
  %s79 = smul.u32 2, %s78
  %p80 = scmp.eq.s32.totalorder 0, 0
  // Predicated region
  $region14: #{gqnn_loss.1} parent=0 // pred_check
    %p81 = pneg %p80
  $region15: #{gqnn_loss.1} parent=0 // pred_check_branch
    %83 = sbr.rel (%p81) target = $region17
  $region16: #{gqnn_loss.1} parent=0 // pred_region
    %84 = vst [vmem:[%s3] sm:$0xff] 0.0
    %85 = vst [vmem:[%s3 + $0x8] sm:$0xff] 0.0
    %86 = vst [vmem:[%s3 + $0x10] sm:$0xff] 0.0
  $region17: #{gqnn_loss.1} parent=0 // pred_fallthru
    _
  %v87 = vld [vmem:[%s61] sm:$0xff]
  %v88 = vld [vmem:[%s61 + $0x8] sm:$0xff]
  %v89 = vld [vmem:[%s69] sm:$0xff]
  %v90 = vld [vmem:[%s69 + $0x8] sm:$0xff]
  %v91 = vld [vmem:[%s77] sm:$0xff]
  %v92 = vld [vmem:[%s77 + $0x8] sm:$0xff]
  %v93 = vsub.f32 %v87, %v91
  %v94 = vsub.f32 %v88, %v92
  %v95 = vmax.f32 %v93, 0.0
  %v96 = vmax.f32 %v94, 0.0
  %v97 = vsub.f32 %v91, %v89
  %v98 = vsub.f32 %v92, %v90
  %v99 = vmax.f32 %v97, 0.0
  %v100 = vmax.f32 %v98, 0.0
  %v101 = vadd.f32 %v95, %v99
  %v102 = vadd.f32 %v96, %v100
  %vm103 = vcmp.gt.f32.partialorder %v101, 0.0
  %vm104 = vcmp.gt.f32.partialorder %v102, 0.0
  %v105 = vsel %vm103, 1, 0
  %v106 = vsel %vm104, 1, 0
  %v107 = vcvt.s32.f32 %v105
  %v108 = vcvt.s32.f32 %v106
  %v109 = vsub.f32 %v89, %v87
  %v110 = vsub.f32 %v90, %v88
  %v111 = vadd.f32 %v101, %v102
  %v112 = vadd.f32 %v107, %v108
  %v113 = vadd.f32 %v109, %v110
  %v114 = vld [vmem:[%s3] sm:$0xff]
  %v115 = vadd.f32 %v114, %v111
  %116 = vst [vmem:[%s3] sm:$0xff] %v115
  %s117 = scalar_lea.vmem %s3, 8
  %v118 = vld [vmem:[%s117] sm:$0xff]
  %v119 = vadd.f32 %v118, %v112
  %120 = vst [vmem:[%s117] sm:$0xff] %v119
  %s121 = scalar_lea.vmem %s3, 16
  %v122 = vld [vmem:[%s121] sm:$0xff]
  %v123 = vadd.f32 %v122, %v113
  %124 = vst [vmem:[%s121] sm:$0xff] %v123
  // Predicated region
  $region18: #{gqnn_loss.1} parent=0 // pred_check
    _
  $region19: #{gqnn_loss.1} parent=0 // pred_check_branch
    %126 = sbr.rel (0) target = $region21
  $region20: #{gqnn_loss.1} parent=0 // pred_region
    _
  $region21: #{gqnn_loss.1} parent=0 // pred_fallthru
    _
  // Predicated region
  $region22: #{gqnn_loss.1} parent=0 // pred_check
    _
  $region23: #{gqnn_loss.1} parent=0 // pred_check_branch
    %128 = sbr.rel (0) target = $region25
  $region24: #{gqnn_loss.1} parent=0 // pred_region
    _
  $region25: #{gqnn_loss.1} parent=0 // pred_fallthru
    _

</llo_original>
